<compile_context>
chip_gen: v5e
topology: v5e:2x2
jax: 0.10.0
libtpu: 0.0.40
codegen_flags: <defaults>
</compile_context>

<pallas_src>
import jax
import jax.numpy as jnp
from jax.experimental import pallas as pl
from jax.experimental.pallas import tpu as pltpu


# --------------------------------------------------------------------------- kernels
def _conv2x2_kernel(x_ref, w_ref, o_ref):
    # x_ref: (K, ts) patch columns, w_ref: (Co, K), o_ref: (Co, ts) lane-dense.
    o_ref[...] = jnp.dot(
        w_ref[...], x_ref[...], preferred_element_type=jnp.float32
    ).astype(o_ref.dtype)


def _conv2x2_kernel_ktiled(x_ref, w_ref, o_ref, acc_ref):
    # K-tiled variant (very large C): f32 VMEM accumulator across the k grid axis.
    k = pl.program_id(2)

    @pl.when(k == 0)
    def _():
        acc_ref[...] = jnp.zeros_like(acc_ref)

    acc_ref[...] += jnp.dot(
        w_ref[...], x_ref[...], preferred_element_type=jnp.float32
    )

    @pl.when(k == pl.num_programs(2) - 1)
    def _():
        o_ref[...] = acc_ref[...].astype(o_ref.dtype)


# --------------------------------------------------------------------------- tiling
def _round_down(v, m):
    return (v // m) * m


def _pick_tiles(K, Co, S_tot, in_isz, out_isz, vmem_budget):
    """Choose (tk, ts, weight_single_buffered) within the VMEM budget."""
    ts_target = min(512, S_tot)

    def max_ts(tk, wbuf):
        w_bytes = wbuf * Co * tk * in_isz
        # double-buffered input cols + double-buffered output cols + f32 acc col.
        per_col = 2 * tk * in_isz + 2 * Co * out_isz + 4 * Co
        return (vmem_budget - w_bytes) // per_col

    # Candidates, cheapest structural change first:
    #  1. full K, double-buffered weight (grid-constant -> fetched once anyway)
    #  2. full K, single-buffered weight (reclaims K*Co bytes when the weight is big)
    #  3. K-tiling (only when 128-aligned) with an f32 accumulator
    candidates = [(K, 2)]
    if Co * K * in_isz >= (4 << 20):
        candidates.append((K, 1))
    if K % 128 == 0:
        candidates += [
            (tk, 2) for tk in (4096, 2048, 1024, 512, 256, 128)
            if tk < K and K % tk == 0
        ]

    tk, wbuf = candidates[0]
    ts = max_ts(tk, wbuf)
    for cand_tk, cand_wbuf in candidates[1:]:
        if ts >= ts_target:
            break
        tk, wbuf = cand_tk, cand_wbuf
        ts = max_ts(tk, wbuf)

    ts = int(max(128, min(ts, 4096)))
    if S_tot <= ts:
        ts = S_tot                          # full extent is always a legal block dim
    else:
        floor = 512 if S_tot >= 512 else 128
        ts = max(floor, _round_down(ts, 128))
    return tk, ts, wbuf == 1


# --------------------------------------------------------------------------- forward
def encoder_tail_forward(x_nchw, weight, *, compute_dtype=jnp.bfloat16):
    """_EncoderTail forward: Conv2d(C -> 2C, kernel 2x2, stride 2, bias=False).

    x_nchw: (N, C, H, W) NCHW activation; weight: (2C, C, 2, 2) OIHW conv weight.
    Returns (N, 2C, H//2, W//2) NCHW in x's dtype. `compute_dtype` sets the MXU
    feed (bf16 by default; accumulation is always f32). Pass jnp.float32/None
    for an exact f32 feed.
    """
    N, C, H, W = x_nchw.shape
    Co, Ci, kh, kw = weight.shape
    assert Ci == C and kh == 2 and kw == 2 and Co == 2 * C
    Ho, Wo = H // 2, W // 2
    K = 4 * C
    P = Ho * Wo
    out_dtype = x_nchw.dtype

    # Cast BEFORE the space-to-depth so the layout pass (if not fused away) and the
    # kernel's input DMA move the narrow dtype.
    if compute_dtype is not None and x_nchw.dtype != compute_dtype:
        x_nchw = x_nchw.astype(compute_dtype)
        weight = weight.astype(compute_dtype)
    in_isz = jnp.dtype(x_nchw.dtype).itemsize
    out_isz = jnp.dtype(out_dtype).itemsize

    # PyTorch's stride-2 kernel-2 conv drops odd trailing rows/cols.
    if H != 2 * Ho or W != 2 * Wo:
        x_nchw = x_nchw[:, :, : 2 * Ho, : 2 * Wo]

    # ---- space-to-depth -> matmul operand -----------------------------------
    # Contraction index ordered (c, kh, kw) to match the OIHW weight flattening.
    # This transpose is the only layout op over x; allow_input_fusion below lets
    # XLA fold it into the kernel's input DMA instead of materializing xt in HBM.
    fold_batch = (Co <= 64) and (N > 1) and (P < 512)
    if fold_batch:
        # Small Co / small per-image spatial: fold N into the lane axis so tiles
        # stay lane-dense (>=128 lanes) and the grid-step count drops.
        xt = (
            x_nchw.reshape(N, C, Ho, 2, Wo, 2)
            .transpose(1, 3, 5, 0, 2, 4)            # (C, 2, 2, N, Ho, Wo)
            .reshape(1, K, N * P)
        )
        B_grid, S_tot = 1, N * P
    else:
        xt = (
            x_nchw.reshape(N, C, Ho, 2, Wo, 2)
            .transpose(0, 1, 3, 5, 2, 4)            # (N, C, 2, 2, Ho, Wo)
            .reshape(N, K, P)
        )
        B_grid, S_tot = N, P
    w_mat = weight.reshape(Co, K)                   # free: same (c, kh, kw) order

    # ---- tiling / VMEM budget ------------------------------------------------
    try:
        vmem_cap = pltpu.get_tpu_info().vmem_capacity_bytes
    except Exception:
        vmem_cap = 64 * 1024 * 1024                 # conservative: v7x per-core VMEM
    vmem_limit = min((vmem_cap * 3) // 4, 112 * 1024 * 1024)
    tk, ts, single_buf_w = _pick_tiles(
        K, Co, S_tot, in_isz, out_isz, (vmem_limit * 85) // 100
    )
    n_s = pl.cdiv(S_tot, ts)
    n_k = pl.cdiv(K, tk)
    if B_grid * n_s * n_k == 1 and S_tot >= 256:    # keep >=2 steps for megacore
        ts = max(128, _round_down(pl.cdiv(S_tot, 2), 128))
        n_s = pl.cdiv(S_tot, ts)

    w_spec_kwargs = {}
    if single_buf_w and n_k == 1:
        # Grid-constant resident weight: double-buffering it only wastes VMEM.
        w_spec_kwargs["pipeline_mode"] = pl.Buffered(1)

    if n_k == 1:
        kernel = _conv2x2_kernel
        scratch_shapes = ()
    else:
        kernel = _conv2x2_kernel_ktiled
        scratch_shapes = [pltpu.VMEM((Co, ts), jnp.float32)]

    cost = pl.CostEstimate(
        flops=2 * B_grid * Co * K * S_tot,
        transcendentals=0,
        bytes_accessed=(B_grid * K * S_tot + K * Co) * in_isz
        + B_grid * Co * S_tot * out_isz,
    )

    out = pl.pallas_call(
        kernel,
        out_shape=jax.ShapeDtypeStruct((B_grid, Co, S_tot), out_dtype),
        grid=(B_grid, n_s, n_k),                    # reduction axis last
        in_specs=[
            pl.BlockSpec((None, tk, ts), lambda b, s, k: (b, k, s)),
            pl.BlockSpec((Co, tk), lambda b, s, k: (0, k), **w_spec_kwargs),
        ],
        out_specs=pl.BlockSpec((None, Co, ts), lambda b, s, k: (b, 0, s)),
        scratch_shapes=scratch_shapes,
        compiler_params=pltpu.CompilerParams(
            dimension_semantics=("parallel", "parallel", "arbitrary"),
            vmem_limit_bytes=vmem_limit,
            allow_input_fusion=[True, False],       # fold space-to-depth into input DMA
        ),
        cost_estimate=cost,
    )(xt, w_mat)

    if fold_batch:
        # (Co, N*P) -> NCHW; cheap at the small Co / small P sizes taking this path.
        return out[0].reshape(Co, N, Ho, Wo).transpose(1, 0, 2, 3)
    # (N, Co, Ho*Wo) -> NCHW: free reshape, no transpose.
    return out.reshape(N, Co, Ho, Wo)


if __name__ == "__main__":
    planes = 4
    N, H, W = 2, 16, 16

    key = jax.random.PRNGKey(0)
    kx, kw_ = jax.random.split(key)

    x = jax.random.normal(kx, (N, planes, H, W), dtype=jnp.float32)
    # Deterministic conv weight, PyTorch OIHW layout: (2*planes, planes, 2, 2)
    fan_in = planes * 2 * 2
    bound = 1.0 / (fan_in ** 0.5)
    w = jax.random.uniform(
        kw_, (2 * planes, planes, 2, 2), dtype=jnp.float32,
        minval=-bound, maxval=bound,
    )

    fwd = jax.jit(encoder_tail_forward, static_argnames=("compute_dtype",))

    def conv_ref(xa, wa):
        return jax.lax.conv_general_dilated(
            xa, wa, window_strides=(2, 2), padding="VALID",
            dimension_numbers=("NCHW", "OIHW", "NCHW"),
            precision=jax.lax.Precision.HIGHEST,
        )

    # 1) f32 feed (exercises the folded-batch path: Co=8, per-image P=64).
    y32 = jax.block_until_ready(fwd(x, w, compute_dtype=jnp.float32))
    assert y32.shape == (N, 2 * planes, H // 2, W // 2)
    assert jnp.allclose(y32, conv_ref(x, w), atol=1e-4, rtol=1e-4)

    # 2) default bf16 MXU feed (f32 accumulation): compare against the exact conv
    #    of the bf16-rounded inputs (the same quantization the kernel sees).
    ybf = jax.block_until_ready(fwd(x, w))
    xr = x.astype(jnp.bfloat16).astype(jnp.float32)
    wr = w.astype(jnp.bfloat16).astype(jnp.float32)
    assert ybf.shape == (N, 2 * planes, H // 2, W // 2)
    assert jnp.allclose(ybf, conv_ref(xr, wr), atol=1e-3, rtol=1e-3)

    # 3) batched path with a spatial extent that is not a multiple of 128
    #    (P = 576 -> masked tail tile with the 256-lane split).
    planes2, H2, W2 = 8, 48, 48
    x2 = jax.random.normal(
        jax.random.PRNGKey(1), (1, planes2, H2, W2), dtype=jnp.float32
    )
    w2 = jax.random.uniform(
        jax.random.PRNGKey(2), (2 * planes2, planes2, 2, 2), dtype=jnp.float32,
        minval=-0.25, maxval=0.25,
    )
    y2 = jax.block_until_ready(fwd(x2, w2, compute_dtype=jnp.float32))
    assert jnp.allclose(y2, conv_ref(x2, w2), atol=1e-4, rtol=1e-4)

    print("KERNEL_OK")
</pallas_src>

<mosaic_0001>
module attributes {stable_mosaic.version = 11 : i64} {
  func.func @_conv2x2_kernel(%arg0: i32, %arg1: i32, %arg2: i32, %arg3: memref<1x16x128xf32, #tpu.memory_space<vmem>>, %arg4: memref<8x16xf32, #tpu.memory_space<vmem>>, %arg5: memref<1x8x128xf32, #tpu.memory_space<vmem>>) attributes {dimension_semantics = [#tpu.dimension_semantics<parallel>, #tpu.dimension_semantics<parallel>, #tpu.dimension_semantics<arbitrary>], iteration_bounds = array<i64: 1, 1, 1>, scalar_prefetch = 0 : i64, scratch_operands = 0 : i64, tpu.core_type = #tpu.core_type<tc>, window_params = [{transform_indices = @transform_0, window_bounds = array<i64: 1, 16, 128>}, {transform_indices = @transform_1, window_bounds = array<i64: 8, 16>}, {transform_indices = @transform_2, window_bounds = array<i64: 1, 8, 128>}]} {
    %c0 = arith.constant 0 : index
    %c0_0 = arith.constant 0 : index
    %0 = vector.load %arg4[%c0, %c0_0] : memref<8x16xf32, #tpu.memory_space<vmem>>, vector<8x16xf32>
    %c0_1 = arith.constant 0 : index
    %c0_2 = arith.constant 0 : index
    %c0_3 = arith.constant 0 : index
    %1 = vector.load %arg3[%c0_1, %c0_2, %c0_3] : memref<1x16x128xf32, #tpu.memory_space<vmem>>, vector<1x16x128xf32>
    %2 = vector.shape_cast %1 : vector<1x16x128xf32> to vector<16x128xf32>
    %cst = arith.constant dense<0.000000e+00> : vector<8x128xf32>
    %3 = tpu.matmul %0, %2, %cst {dimension_numbers = #tpu.dot_dimension_numbers<[1], [0], [0], [1], [0, 0, 1, 1], [], []>} : vector<8x16xf32>, vector<16x128xf32>, vector<8x128xf32> -> vector<8x128xf32>
    %c0_4 = arith.constant 0 : index
    %c0_5 = arith.constant 0 : index
    %c0_6 = arith.constant 0 : index
    %4 = vector.load %arg5[%c0_4, %c0_5, %c0_6] : memref<1x8x128xf32, #tpu.memory_space<vmem>>, vector<1x8x128xf32>
    %5 = vector.shape_cast %4 : vector<1x8x128xf32> to vector<8x128xf32>
    %6 = vector.shape_cast %3 : vector<8x128xf32> to vector<1x8x128xf32>
    tpu.vector_store %arg5[%c0_4, %c0_5, %c0_6], %6 {strides = array<i32>} : memref<1x8x128xf32, #tpu.memory_space<vmem>>, vector<1x8x128xf32>,
    return
  }
  func.func @transform_0(%arg0: i32, %arg1: i32, %arg2: i32) -> (i32, i32, i32) {
    %c0_i32 = arith.constant 0 : i32
    return %arg0, %arg2, %arg1 : i32, i32, i32
  }
  func.func @transform_1(%arg0: i32, %arg1: i32, %arg2: i32) -> (i32, i32) {
    %c0_i32 = arith.constant 0 : i32
    %c0_i32_0 = arith.constant 0 : i32
    return %c0_i32, %arg2 : i32, i32
  }
  func.func @transform_2(%arg0: i32, %arg1: i32, %arg2: i32) -> (i32, i32, i32) {
    %c0_i32 = arith.constant 0 : i32
    %c0_i32_0 = arith.constant 0 : i32
    return %arg0, %c0_i32, %arg1 : i32, i32, i32
  }
}

</mosaic_0001>

<llo_original>
// kernel: squeeze.1
$region0: #{squeeze.1}
  %s0 = inlined_call_operand.vmem [shape: f32[1,8,128], index: 0, kind: input, shape index: {}]
  %s1 = inlined_call_operand.vmem [shape: f32[8,2,8,8], index: 1, kind: output, shape index: {}]
  %v2 = vld [vmem:[%s0] sm:$0xff]
  %vm3 = vcmask 64512
  %4 = vst.msk [vmem:[%s1] ss:$16 sm:$0x3] %vm3, %v2
  %5 = vst.msk [vmem:[%s1] ss:$16 sm:$0xc] %vm3, %v2
  %6 = vst.msk [vmem:[%s1] ss:$16 sm:$0x30] %vm3, %v2
  %7 = vst.msk [vmem:[%s1] ss:$16 sm:$0xc0] %vm3, %v2
  %v8 = vld [vmem:[%s0] sm:$0xff]
  %9 = vrot.lane.b32.xlu0 %v8, 120
  %v10 = vpop.permute.xlu0 %9
  %vm11 = vcmask 64512
  %s12 = scalar_lea.vmem %s1, 1
  %13 = vst.msk [vmem:[%s12] ss:$16 sm:$0x3] %vm11, %v10
  %s14 = scalar_lea.vmem %s1, 1
  %15 = vst.msk [vmem:[%s14] ss:$16 sm:$0xc] %vm11, %v10
  %s16 = scalar_lea.vmem %s1, 1
  %17 = vst.msk [vmem:[%s16] ss:$16 sm:$0x30] %vm11, %v10
  %s18 = scalar_lea.vmem %s1, 1
  %19 = vst.msk [vmem:[%s18] ss:$16 sm:$0xc0] %vm11, %v10
  %v20 = vld [vmem:[%s0] sm:$0xff]
  %21 = vrot.lane.b32.xlu0 %v20, 112
  %v22 = vpop.permute.xlu0 %21
  %vm23 = vcmask 64512
  %s24 = scalar_lea.vmem %s1, 2
  %25 = vst.msk [vmem:[%s24] ss:$16 sm:$0x3] %vm23, %v22
  %s26 = scalar_lea.vmem %s1, 2
  %27 = vst.msk [vmem:[%s26] ss:$16 sm:$0xc] %vm23, %v22
  %s28 = scalar_lea.vmem %s1, 2
  %29 = vst.msk [vmem:[%s28] ss:$16 sm:$0x30] %vm23, %v22
  %s30 = scalar_lea.vmem %s1, 2
  %31 = vst.msk [vmem:[%s30] ss:$16 sm:$0xc0] %vm23, %v22
  %v32 = vld [vmem:[%s0] sm:$0xff]
  %33 = vrot.lane.b32.xlu0 %v32, 104
  %v34 = vpop.permute.xlu0 %33
  %vm35 = vcmask 64512
  %s36 = scalar_lea.vmem %s1, 3
  %37 = vst.msk [vmem:[%s36] ss:$16 sm:$0x3] %vm35, %v34
  %s38 = scalar_lea.vmem %s1, 3
  %39 = vst.msk [vmem:[%s38] ss:$16 sm:$0xc] %vm35, %v34
  %s40 = scalar_lea.vmem %s1, 3
  %41 = vst.msk [vmem:[%s40] ss:$16 sm:$0x30] %vm35, %v34
  %s42 = scalar_lea.vmem %s1, 3
  %43 = vst.msk [vmem:[%s42] ss:$16 sm:$0xc0] %vm35, %v34
  %v44 = vld [vmem:[%s0] sm:$0xff]
  %45 = vrot.lane.b32.xlu0 %v44, 96
  %v46 = vpop.permute.xlu0 %45
  %vm47 = vcmask 64512
  %s48 = scalar_lea.vmem %s1, 4
  %49 = vst.msk [vmem:[%s48] ss:$16 sm:$0x3] %vm47, %v46
  %s50 = scalar_lea.vmem %s1, 4
  %51 = vst.msk [vmem:[%s50] ss:$16 sm:$0xc] %vm47, %v46
  %s52 = scalar_lea.vmem %s1, 4
  %53 = vst.msk [vmem:[%s52] ss:$16 sm:$0x30] %vm47, %v46
  %s54 = scalar_lea.vmem %s1, 4
  %55 = vst.msk [vmem:[%s54] ss:$16 sm:$0xc0] %vm47, %v46
  %v56 = vld [vmem:[%s0] sm:$0xff]
  %57 = vrot.lane.b32.xlu0 %v56, 88
  %v58 = vpop.permute.xlu0 %57
  %vm59 = vcmask 64512
  %s60 = scalar_lea.vmem %s1, 5
  %61 = vst.msk [vmem:[%s60] ss:$16 sm:$0x3] %vm59, %v58
  %s62 = scalar_lea.vmem %s1, 5
  %63 = vst.msk [vmem:[%s62] ss:$16 sm:$0xc] %vm59, %v58
  %s64 = scalar_lea.vmem %s1, 5
  %65 = vst.msk [vmem:[%s64] ss:$16 sm:$0x30] %vm59, %v58
  %s66 = scalar_lea.vmem %s1, 5
  %67 = vst.msk [vmem:[%s66] ss:$16 sm:$0xc0] %vm59, %v58
  %v68 = vld [vmem:[%s0] sm:$0xff]
  %69 = vrot.lane.b32.xlu0 %v68, 80
  %v70 = vpop.permute.xlu0 %69
  %vm71 = vcmask 64512
  %s72 = scalar_lea.vmem %s1, 6
  %73 = vst.msk [vmem:[%s72] ss:$16 sm:$0x3] %vm71, %v70
  %s74 = scalar_lea.vmem %s1, 6
  %75 = vst.msk [vmem:[%s74] ss:$16 sm:$0xc] %vm71, %v70
  %s76 = scalar_lea.vmem %s1, 6
  %77 = vst.msk [vmem:[%s76] ss:$16 sm:$0x30] %vm71, %v70
  %s78 = scalar_lea.vmem %s1, 6
  %79 = vst.msk [vmem:[%s78] ss:$16 sm:$0xc0] %vm71, %v70
  %v80 = vld [vmem:[%s0] sm:$0xff]
  %81 = vrot.lane.b32.xlu0 %v80, 72
  %v82 = vpop.permute.xlu0 %81
  %vm83 = vcmask 64512
  %s84 = scalar_lea.vmem %s1, 7
  %85 = vst.msk [vmem:[%s84] ss:$16 sm:$0x3] %vm83, %v82
  %s86 = scalar_lea.vmem %s1, 7
  %87 = vst.msk [vmem:[%s86] ss:$16 sm:$0xc] %vm83, %v82
  %s88 = scalar_lea.vmem %s1, 7
  %89 = vst.msk [vmem:[%s88] ss:$16 sm:$0x30] %vm83, %v82
  %s90 = scalar_lea.vmem %s1, 7
  %91 = vst.msk [vmem:[%s90] ss:$16 sm:$0xc0] %vm83, %v82
  %v92 = vld [vmem:[%s0] sm:$0xff]
  %93 = vrot.lane.b32.xlu0 %v92, 64
  %v94 = vpop.permute.xlu0 %93
  %vm95 = vcmask 64512
  %s96 = scalar_lea.vmem %s1, 8
  %97 = vst.msk [vmem:[%s96] ss:$16 sm:$0x3] %vm95, %v94
  %s98 = scalar_lea.vmem %s1, 8
  %99 = vst.msk [vmem:[%s98] ss:$16 sm:$0xc] %vm95, %v94
  %s100 = scalar_lea.vmem %s1, 8
  %101 = vst.msk [vmem:[%s100] ss:$16 sm:$0x30] %vm95, %v94
  %s102 = scalar_lea.vmem %s1, 8
  %103 = vst.msk [vmem:[%s102] ss:$16 sm:$0xc0] %vm95, %v94
  %v104 = vld [vmem:[%s0] sm:$0xff]
  %105 = vrot.lane.b32.xlu0 %v104, 56
  %v106 = vpop.permute.xlu0 %105
  %vm107 = vcmask 64512
  %s108 = scalar_lea.vmem %s1, 9
  %109 = vst.msk [vmem:[%s108] ss:$16 sm:$0x3] %vm107, %v106
  %s110 = scalar_lea.vmem %s1, 9
  %111 = vst.msk [vmem:[%s110] ss:$16 sm:$0xc] %vm107, %v106
  %s112 = scalar_lea.vmem %s1, 9
  %113 = vst.msk [vmem:[%s112] ss:$16 sm:$0x30] %vm107, %v106
  %s114 = scalar_lea.vmem %s1, 9
  %115 = vst.msk [vmem:[%s114] ss:$16 sm:$0xc0] %vm107, %v106
  %v116 = vld [vmem:[%s0] sm:$0xff]
  %117 = vrot.lane.b32.xlu0 %v116, 48
  %v118 = vpop.permute.xlu0 %117
  %vm119 = vcmask 64512
  %s120 = scalar_lea.vmem %s1, 10
  %121 = vst.msk [vmem:[%s120] ss:$16 sm:$0x3] %vm119, %v118
  %s122 = scalar_lea.vmem %s1, 10
  %123 = vst.msk [vmem:[%s122] ss:$16 sm:$0xc] %vm119, %v118
  %s124 = scalar_lea.vmem %s1, 10
  %125 = vst.msk [vmem:[%s124] ss:$16 sm:$0x30] %vm119, %v118
  %s126 = scalar_lea.vmem %s1, 10
  %127 = vst.msk [vmem:[%s126] ss:$16 sm:$0xc0] %vm119, %v118
  %v128 = vld [vmem:[%s0] sm:$0xff]
  %129 = vrot.lane.b32.xlu0 %v128, 40
  %v130 = vpop.permute.xlu0 %129
  %vm131 = vcmask 64512
  %s132 = scalar_lea.vmem %s1, 11
  %133 = vst.msk [vmem:[%s132] ss:$16 sm:$0x3] %vm131, %v130
  %s134 = scalar_lea.vmem %s1, 11
  %135 = vst.msk [vmem:[%s134] ss:$16 sm:$0xc] %vm131, %v130
  %s136 = scalar_lea.vmem %s1, 11
  %137 = vst.msk [vmem:[%s136] ss:$16 sm:$0x30] %vm131, %v130
  %s138 = scalar_lea.vmem %s1, 11
  %139 = vst.msk [vmem:[%s138] ss:$16 sm:$0xc0] %vm131, %v130
  %v140 = vld [vmem:[%s0] sm:$0xff]
  %141 = vrot.lane.b32.xlu0 %v140, 32
  %v142 = vpop.permute.xlu0 %141
  %vm143 = vcmask 64512
  %s144 = scalar_lea.vmem %s1, 12
  %145 = vst.msk [vmem:[%s144] ss:$16 sm:$0x3] %vm143, %v142
  %s146 = scalar_lea.vmem %s1, 12
  %147 = vst.msk [vmem:[%s146] ss:$16 sm:$0xc] %vm143, %v142
  %s148 = scalar_lea.vmem %s1, 12
  %149 = vst.msk [vmem:[%s148] ss:$16 sm:$0x30] %vm143, %v142
  %s150 = scalar_lea.vmem %s1, 12
  %151 = vst.msk [vmem:[%s150] ss:$16 sm:$0xc0] %vm143, %v142
  %v152 = vld [vmem:[%s0] sm:$0xff]
  %153 = vrot.lane.b32.xlu0 %v152, 24
  %v154 = vpop.permute.xlu0 %153
  %vm155 = vcmask 64512
  %s156 = scalar_lea.vmem %s1, 13
  %157 = vst.msk [vmem:[%s156] ss:$16 sm:$0x3] %vm155, %v154
  %s158 = scalar_lea.vmem %s1, 13
  %159 = vst.msk [vmem:[%s158] ss:$16 sm:$0xc] %vm155, %v154
  %s160 = scalar_lea.vmem %s1, 13
  %161 = vst.msk [vmem:[%s160] ss:$16 sm:$0x30] %vm155, %v154
  %s162 = scalar_lea.vmem %s1, 13
  %163 = vst.msk [vmem:[%s162] ss:$16 sm:$0xc0] %vm155, %v154
  %v164 = vld [vmem:[%s0] sm:$0xff]
  %165 = vrot.lane.b32.xlu0 %v164, 16
  %v166 = vpop.permute.xlu0 %165
  %vm167 = vcmask 64512
  %s168 = scalar_lea.vmem %s1, 14
  %169 = vst.msk [vmem:[%s168] ss:$16 sm:$0x3] %vm167, %v166
  %s170 = scalar_lea.vmem %s1, 14
  %171 = vst.msk [vmem:[%s170] ss:$16 sm:$0xc] %vm167, %v166
  %s172 = scalar_lea.vmem %s1, 14
  %173 = vst.msk [vmem:[%s172] ss:$16 sm:$0x30] %vm167, %v166
  %s174 = scalar_lea.vmem %s1, 14
  %175 = vst.msk [vmem:[%s174] ss:$16 sm:$0xc0] %vm167, %v166
  %v176 = vld [vmem:[%s0] sm:$0xff]
  %177 = vrot.lane.b32.xlu0 %v176, 8
  %v178 = vpop.permute.xlu0 %177
  %vm179 = vcmask 64512
  %s180 = scalar_lea.vmem %s1, 15
  %181 = vst.msk [vmem:[%s180] ss:$16 sm:$0x3] %vm179, %v178
  %s182 = scalar_lea.vmem %s1, 15
  %183 = vst.msk [vmem:[%s182] ss:$16 sm:$0xc] %vm179, %v178
  %s184 = scalar_lea.vmem %s1, 15
  %185 = vst.msk [vmem:[%s184] ss:$16 sm:$0x30] %vm179, %v178
  %s186 = scalar_lea.vmem %s1, 15
  %187 = vst.msk [vmem:[%s186] ss:$16 sm:$0xc0] %vm179, %v178

// kernel: encoder_tail_forward.1
$region0: #{encoder_tail_forward.1}
  #allocation0 [shape = 'u32[]', space=smem, size = 0x4, offset = 0x4, fixed_abs, tag = 'smem constant byte address 0x4 - core index']
  #allocation1 [shape = 'u32[72,128]{1,0:T(1,128)}', space=vmem, size = 0x9000, scoped, tag = 'internal scratch']
  %s0 = inlined_call_operand.vmem [shape: f32[1,16,128], index: 0, kind: input, shape index: {}]
  %s1 = inlined_call_operand.vmem [shape: f32[8,16], index: 1, kind: input, shape index: {}]
  %s2 = inlined_call_operand.vmem [shape: f32[1,8,128], index: 2, kind: output, shape index: {}]
  %s3 = sld [smem:[#allocation0]]
  $region18: #{encoder_tail_forward.1} parent=0
    _
  %s5 = ssub.s32 1, %s3
  %s6 = scalar_select 0, %s5, %s3
  // Predicated region
  $region2: #{encoder_tail_forward.1} parent=0 // pred_check
    _
  $region3: #{encoder_tail_forward.1} parent=0 // pred_check_branch
    %8 = sbr.rel (0) target = $region5
  $region4: #{encoder_tail_forward.1} parent=0 // pred_region
    _
  $region5: #{encoder_tail_forward.1} parent=0 // pred_fallthru
    _
  // Predicated region
  $region6: #{encoder_tail_forward.1} parent=0 // pred_check
    _
  $region7: #{encoder_tail_forward.1} parent=0 // pred_check_branch
    %10 = sbr.rel (0) target = $region9
  $region8: #{encoder_tail_forward.1} parent=0 // pred_region
    _
  $region9: #{encoder_tail_forward.1} parent=0 // pred_fallthru
    _
  %v11 = vld [vmem:[%s1] sm:$0xff]
  %v12 = vld [vmem:[%s0] sm:$0xff]
  %v13 = vld [vmem:[%s0 + $0x8] sm:$0xff]
  %vm14 = vcmask 130048
  %v16 = vsel %vm14, %v11, 0
  %18 = vmatpush.msra.mxu0 0.0
  %19 = vmatpush.msra.mxu0 0.0
  %20 = vmatpush.msra.mxu0 0.0
  %21 = vmatpush.msra.mxu0 0.0
  %22 = vmatpush.msra.mxu0 0.0
  %23 = vmatpush.msra.mxu0 0.0
  %24 = vmatpush.msra.mxu0 0.0
  %25 = vmatpush.msra.mxu0 0.0
  %26 = vmatpush.msra.mxu0 0.0
  %27 = vmatpush.msra.mxu0 0.0
  %28 = vmatpush.msra.mxu0 0.0
  %29 = vmatpush.msra.mxu0 0.0
  %30 = vmatpush.msra.mxu0 0.0
  %31 = vmatpush.msra.mxu0 0.0
  %32 = vmatpush.msra.mxu0 %v13
  %33 = vmatpush.msra.mxu0 %v12
  %34 = vmatmul.f32.gmra.mxu0 %v16
  %v35 = vpop.f32.mrf.mxu0
  %v36 = vadd.f32 0.0, %v35
  %37 = vdwg.mxu0
  %38 = vst [vmem:[%s2] sm:$0xff] %v36
  // Predicated region
  $region10: #{encoder_tail_forward.1} parent=0 // pred_check
    _
  $region11: #{encoder_tail_forward.1} parent=0 // pred_check_branch
    %40 = sbr.rel (0) target = $region13
  $region12: #{encoder_tail_forward.1} parent=0 // pred_region
    _
  $region13: #{encoder_tail_forward.1} parent=0 // pred_fallthru
    _
  // Predicated region
  $region14: #{encoder_tail_forward.1} parent=0 // pred_check
    _
  $region15: #{encoder_tail_forward.1} parent=0 // pred_check_branch
    %42 = sbr.rel (0) target = $region17
  $region16: #{encoder_tail_forward.1} parent=0 // pred_region
    _
  $region17: #{encoder_tail_forward.1} parent=0 // pred_fallthru
    _

</llo_original>
